<compile_context>
chip_gen: v7x
topology: tpu7x:2x2x1
jax: 0.10.0
libtpu: 0.0.40
codegen_flags: <defaults>
</compile_context>

<pallas_src>
import functools

import jax
import jax.numpy as jnp
from jax.experimental import pallas as pl
from jax.experimental.pallas import tpu as pltpu


def _round_up(x, m):
    return ((x + m - 1) // m) * m


def _ce_hard_kernel(n_rows, logits_ref, targets_ref, out_ref):
    # logits_ref: (TM, C) tile (native dtype), targets_ref: (TM, 1) int tile,
    # out_ref: (TM, 1) f32 per-row loss (padded rows written as 0).
    i = pl.program_id(0)
    tm = logits_ref.shape[0]

    x = logits_ref[...].astype(jnp.float32)                          # (TM, C)
    m = jnp.max(x, axis=-1, keepdims=True)                           # (TM, 1)
    lse = jnp.log(jnp.sum(jnp.exp(x - m), axis=-1, keepdims=True))   # (TM, 1)

    t = targets_ref[...].astype(jnp.int32)                           # .long()
    col = jax.lax.broadcasted_iota(jnp.int32, x.shape, 1)
    picked = jnp.sum(jnp.where(col == t, x, jnp.float32(0.0)),
                     axis=-1, keepdims=True)                         # x[r, t[r]]
    nll = (m + lse) - picked                                         # (TM, 1)

    # mask rows beyond the real batch (ragged last tile)
    row = i * tm + jax.lax.broadcasted_iota(jnp.int32, nll.shape, 0)
    out_ref[...] = jnp.where(row < n_rows, nll, jnp.float32(0.0))


def _ce_soft_kernel(n_rows, logits_ref, targets_ref, out_ref):
    # logits_ref / targets_ref: (TM, C) tiles (native dtype),
    # out_ref: (TM, 1) f32 per-row loss.
    i = pl.program_id(0)
    tm = logits_ref.shape[0]

    x = logits_ref[...].astype(jnp.float32)
    m = jnp.max(x, axis=-1, keepdims=True)
    lse = jnp.log(jnp.sum(jnp.exp(x - m), axis=-1, keepdims=True))

    # NOTE: the PyTorch module calls targets.long() unconditionally, so soft
    # targets are truncated to integers before use; reproduced here in-kernel.
    t = targets_ref[...].astype(jnp.int32).astype(jnp.float32)

    # sum(-t * logp) = (m + lse) * sum(t) - sum(t * x)  (folded, no logp tile)
    t_sum = jnp.sum(t, axis=-1, keepdims=True)
    tx = jnp.sum(t * x, axis=-1, keepdims=True)
    row_loss = (m + lse) * t_sum - tx                                # (TM, 1)

    row = i * tm + jax.lax.broadcasted_iota(jnp.int32, row_loss.shape, 0)
    out_ref[...] = jnp.where(row < n_rows, row_loss, jnp.float32(0.0))


def _vmem_capacity_bytes():
    try:
        return int(pltpu.get_tpu_info().vmem_capacity_bytes)
    except Exception:
        return 64 * 1024 * 1024   # conservative (smallest generation: v7x)


@functools.partial(jax.jit,
                   static_argnames=("use_hard_labels", "reduction", "block_rows"))
def cross_entropy(logits, targets, *, use_hard_labels=True, reduction="mean",
                  block_rows=1024):
    """Pallas implementation of Cross_Entropy.forward."""
    if reduction not in ("mean", "sum", "none"):
        raise NotImplementedError(f"reduction={reduction!r} not supported")
    N, C = logits.shape

    # ---- tile sizing: generation-aware, f32-temp-aware VMEM budget -----------
    vmem_cap = _vmem_capacity_bytes()                 # 128 MiB v5e/v6e, 64 MiB v7x
    vmem_limit = min((vmem_cap * 3) // 4, 96 * 1024 * 1024)
    budget = vmem_limit // 2                          # leave pipeline headroom

    logits_row = C * logits.dtype.itemsize            # streamed, double-buffered
    f32_row = C * 4                                    # in-kernel f32 working set
    if use_hard_labels:
        # 2x native tile + ~3 f32 temps (cast, exp, iota/select) + padded int tile
        per_row = 2 * logits_row + 3 * f32_row + 2 * 512
    else:
        tgt_row = C * targets.dtype.itemsize
        per_row = 2 * logits_row + 2 * tgt_row + 3 * f32_row
    tm_cap = max(8, (budget // per_row) // 8 * 8)
    tm = max(8, min(_round_up(block_rows, 8), tm_cap, _round_up(N, 8)))
    n_tiles = pl.cdiv(N, tm)

    # ---- inputs: native dtypes, no wrapper-side padding -----------------------
    if use_hard_labels:
        t = targets.reshape(N, 1)
        t_spec = pl.BlockSpec((tm, 1), lambda i: (i, 0))
        kernel = functools.partial(_ce_hard_kernel, N)
    else:
        t = targets.reshape(N, C)
        t_spec = pl.BlockSpec((tm, C), lambda i: (i, 0))
        kernel = functools.partial(_ce_soft_kernel, N)

    per_row_loss = pl.pallas_call(
        kernel,
        out_shape=jax.ShapeDtypeStruct((n_tiles * tm, 1), jnp.float32),
        grid_spec=pltpu.PrefetchScalarGridSpec(
            num_scalar_prefetch=0,
            grid=(n_tiles,),
            in_specs=[
                pl.BlockSpec((tm, C), lambda i: (i, 0)),   # logits tile
                t_spec,                                     # targets tile
            ],
            out_specs=pl.BlockSpec((tm, 1), lambda i: (i, 0)),  # per-row losses
        ),
        compiler_params=pltpu.CompilerParams(
            dimension_semantics=("parallel",),   # independent tiles -> both TCs on v7x
            vmem_limit_bytes=vmem_limit,
        ),
    )(logits, t)

    if reduction == "none":
        return per_row_loss[:N, 0]
    total = jnp.sum(per_row_loss)        # padded rows were written as 0
    if reduction == "mean":
        return total / jnp.float32(N)
    return total


def _reference(logits, targets, use_hard_labels=True, reduction="mean"):
    # plain-JAX reference of the PyTorch semantics, for verification only
    logp = jax.nn.log_softmax(logits.astype(jnp.float32), axis=-1)
    if use_hard_labels:
        t = targets.astype(jnp.int32)
        nll = -jnp.take_along_axis(logp, t[:, None], axis=-1)[:, 0]
    else:
        t = targets.astype(jnp.int32).astype(jnp.float32)
        nll = jnp.sum(-t * logp, axis=1)
    if reduction == "mean":
        return jnp.mean(nll)
    elif reduction == "sum":
        return jnp.sum(nll)
    return nll


if __name__ == "__main__":
    key = jax.random.PRNGKey(0)
    k_logits, k_targets, k_soft, k_logits2, k_targets2 = jax.random.split(key, 5)

    N, C = 8, 32
    logits = jax.random.normal(k_logits, (N, C), dtype=jnp.float32)
    targets = jax.random.randint(k_targets, (N,), 0, C, dtype=jnp.int32)

    # default module config: use_hard_labels=True, reduction='mean'
    loss = cross_entropy(logits, targets, use_hard_labels=True, reduction="mean")
    loss = jax.block_until_ready(loss)
    ref = _reference(logits, targets, use_hard_labels=True, reduction="mean")
    assert jnp.allclose(loss, ref, atol=1e-5, rtol=1e-5), (loss, ref)

    # soft-label branch (with the module's unconditional .long() cast)
    soft_targets = jax.nn.softmax(jax.random.normal(k_soft, (N, C)), axis=-1)
    loss_soft = cross_entropy(logits, soft_targets, use_hard_labels=False,
                              reduction="sum")
    loss_soft = jax.block_until_ready(loss_soft)
    ref_soft = _reference(logits, soft_targets, use_hard_labels=False,
                          reduction="sum")
    assert jnp.allclose(loss_soft, ref_soft, atol=1e-5, rtol=1e-5), (loss_soft, ref_soft)

    # ragged batch (exercises the no-pad, in-kernel row-masking path)
    N2 = 10
    logits2 = jax.random.normal(k_logits2, (N2, C), dtype=jnp.float32)
    targets2 = jax.random.randint(k_targets2, (N2,), 0, C, dtype=jnp.int32)
    loss2 = cross_entropy(logits2, targets2, use_hard_labels=True, reduction="mean")
    loss2 = jax.block_until_ready(loss2)
    ref2 = _reference(logits2, targets2, use_hard_labels=True, reduction="mean")
    assert jnp.allclose(loss2, ref2, atol=1e-5, rtol=1e-5), (loss2, ref2)

    # reduction='none' (per-sample losses, supported by the per-row output layout)
    loss_none = cross_entropy(logits2, targets2, use_hard_labels=True,
                              reduction="none")
    loss_none = jax.block_until_ready(loss_none)
    ref_none = _reference(logits2, targets2, use_hard_labels=True, reduction="none")
    assert jnp.allclose(loss_none, ref_none, atol=1e-5, rtol=1e-5), (loss_none, ref_none)

    print("KERNEL_OK")
</pallas_src>

<mosaic_0001>
module attributes {stable_mosaic.version = 11 : i64} {
  func.func @_ce_hard_kernel(%arg0: i32, %arg1: memref<8x32xf32, #tpu.memory_space<vmem>>, %arg2: memref<8x1xi32, #tpu.memory_space<vmem>>, %arg3: memref<8x1xf32, #tpu.memory_space<vmem>>) attributes {dimension_semantics = [#tpu.dimension_semantics<parallel>], iteration_bounds = array<i64: 1>, scalar_prefetch = 0 : i64, scratch_operands = 0 : i64, tpu.core_type = #tpu.core_type<tc>, window_params = [{transform_indices = @transform_0, window_bounds = array<i64: 8, 32>}, {transform_indices = @transform_1, window_bounds = array<i64: 8, 1>}, {transform_indices = @transform_2, window_bounds = array<i64: 8, 1>}]} {
    %c0 = arith.constant 0 : index
    %c0_0 = arith.constant 0 : index
    %0 = vector.load %arg1[%c0, %c0_0] : memref<8x32xf32, #tpu.memory_space<vmem>>, vector<8x32xf32>
    %cst = arith.constant dense<0xFF800000> : vector<8xf32>
    %1 = vector.multi_reduction <maximumf>, %0, %cst [1] : vector<8x32xf32> to vector<8xf32>
    %2 = vector.shape_cast %1 : vector<8xf32> to vector<8x1xf32>
    %3 = vector.broadcast %2 : vector<8x1xf32> to vector<8x32xf32>
    %4 = arith.subf %0, %3 : vector<8x32xf32>
    %5 = math.exp %4 : vector<8x32xf32>
    %cst_1 = arith.constant dense<0.000000e+00> : vector<8xf32>
    %6 = vector.multi_reduction <add>, %5, %cst_1 [1] : vector<8x32xf32> to vector<8xf32>
    %7 = vector.shape_cast %6 : vector<8xf32> to vector<8x1xf32>
    %8 = math.log %7 : vector<8x1xf32>
    %c0_2 = arith.constant 0 : index
    %c0_3 = arith.constant 0 : index
    %9 = vector.load %arg2[%c0_2, %c0_3] : memref<8x1xi32, #tpu.memory_space<vmem>>, vector<8x1xi32>
    %10 = tpu.iota {dimensions = array<i32: 1>} : vector<8x32xi32>
    %11 = vector.broadcast %9 : vector<8x1xi32> to vector<8x32xi32>
    %12 = arith.cmpi eq, %10, %11 : vector<8x32xi32>
    %cst_4 = arith.constant 0.000000e+00 : f32
    %13 = vector.broadcast %cst_4 : f32 to vector<8x32xf32>
    %14 = arith.select %12, %0, %13 : vector<8x32xi1>, vector<8x32xf32>
    %cst_5 = arith.constant dense<0.000000e+00> : vector<8xf32>
    %15 = vector.multi_reduction <add>, %14, %cst_5 [1] : vector<8x32xf32> to vector<8xf32>
    %16 = vector.shape_cast %15 : vector<8xf32> to vector<8x1xf32>
    %17 = arith.addf %2, %8 : vector<8x1xf32>
    %18 = arith.subf %17, %16 : vector<8x1xf32>
    %c8_i32 = arith.constant 8 : i32
    %19 = arith.muli %arg0, %c8_i32 : i32
    %20 = tpu.iota {dimensions = array<i32: 0>} : vector<8x1xi32>
    %21 = vector.broadcast %19 : i32 to vector<8x1xi32>
    %22 = arith.addi %21, %20 : vector<8x1xi32>
    %c8_i32_6 = arith.constant 8 : i32
    %23 = vector.broadcast %c8_i32_6 : i32 to vector<8x1xi32>
    %24 = arith.cmpi slt, %22, %23 : vector<8x1xi32>
    %cst_7 = arith.constant 0.000000e+00 : f32
    %25 = vector.broadcast %cst_7 : f32 to vector<8x1xf32>
    %26 = arith.select %24, %18, %25 : vector<8x1xi1>, vector<8x1xf32>
    %c0_8 = arith.constant 0 : index
    %c0_9 = arith.constant 0 : index
    %27 = vector.load %arg3[%c0_8, %c0_9] : memref<8x1xf32, #tpu.memory_space<vmem>>, vector<8x1xf32>
    tpu.vector_store %arg3[%c0_8, %c0_9], %26 {strides = array<i32>} : memref<8x1xf32, #tpu.memory_space<vmem>>, vector<8x1xf32>,
    return
  }
  func.func @transform_0(%arg0: i32) -> (i32, i32) {
    %c0_i32 = arith.constant 0 : i32
    %c0_i32_0 = arith.constant 0 : i32
    return %arg0, %c0_i32 : i32, i32
  }
  func.func @transform_1(%arg0: i32) -> (i32, i32) {
    %c0_i32 = arith.constant 0 : i32
    %c0_i32_0 = arith.constant 0 : i32
    return %arg0, %c0_i32 : i32, i32
  }
  func.func @transform_2(%arg0: i32) -> (i32, i32) {
    %c0_i32 = arith.constant 0 : i32
    %c0_i32_0 = arith.constant 0 : i32
    return %arg0, %c0_i32 : i32, i32
  }
}

</mosaic_0001>

<llo_original>
// kernel: cross_entropy.1
$region0: #{cross_entropy.1}
  #allocation0 [shape = 'u32[]', space=smem, size = 0x4, offset = 0x4, fixed_abs, tag = 'smem constant byte address 0x4 - core index']
  #allocation1 [shape = 'u32[144,128]{1,0:T(1,128)}', space=vmem, size = 0x12000, scoped, tag = 'internal scratch']
  %s0 = inlined_call_operand.vmem [shape: f32[8,32], index: 0, kind: input, shape index: {}]
  %s1 = inlined_call_operand.vmem [shape: s32[8,1], index: 1, kind: input, shape index: {}]
  %s2 = inlined_call_operand.vmem [shape: f32[8,1], index: 2, kind: output, shape index: {}]
  %s3 = sld [smem:[#allocation0]]
  $region18: #{cross_entropy.1} parent=0
    _
  %s5 = ssub.s32 1, %s3
  %s6 = scalar_select 0, %s5, %s3
  // Predicated region
  $region2: #{cross_entropy.1} parent=0 // pred_check
    _
  $region3: #{cross_entropy.1} parent=0 // pred_check_branch
    %8 = sbr.rel (0) target = $region5
  $region4: #{cross_entropy.1} parent=0 // pred_region
    _
  $region5: #{cross_entropy.1} parent=0 // pred_fallthru
    _
  // Predicated region
  $region6: #{cross_entropy.1} parent=0 // pred_check
    _
  $region7: #{cross_entropy.1} parent=0 // pred_check_branch
    %10 = sbr.rel (0) target = $region9
  $region8: #{cross_entropy.1} parent=0 // pred_region
    _
  $region9: #{cross_entropy.1} parent=0 // pred_fallthru
    _
  %v11 = vld [vmem:[%s0] sm:$0xff]
  %vm12 = vcmask 261120
  %v13 = vsel %vm12, %v11, -inf
  %14 = vmax.xlane.f32.xlu0 %v13
  %v15 = vpop.xlane.xlu0 %14
  %v16 = vsub.f32 %v11, %v15
  %v17 = vmul.f32 %v16, 1.442695
  %v18 = vpow.pop %v17
  %v19 = vsel %vm12, %v18, 0.0
  %20 = vadd.xlane.f32.xlu0 %v19
  %v21 = vpop.xlane.xlu0 %20
  %v22 = vlog2.pop %v21
  %v23 = vmul.f32 %v22, 0.6931472
  %v24 = vld [vmem:[%s1] sm:$0xff]
  %v25 = vlaneseq
  %v26 = vand.u32 %v25, 127
  %27 = vset.pattern.permute.xlu0 0
  %28 = vperm.xlu0 %27, %v24
  %v29 = vpop.permute.xlu0 %28
  %vm30 = vcmp.eq.s32.totalorder %v26, %v29
  %v31 = vsel %vm30, %v11, 0.0
  %v32 = vsel %vm12, %v31, 0.0
  %33 = vadd.xlane.f32.xlu0 %v32
  %v34 = vpop.xlane.xlu0 %33
  %v35 = vadd.f32 %v15, %v23
  %v36 = vsub.f32 %v35, %v34
  %s37 = smul.u32 0, 8
  %v38 = vlaneseq
  %v39 = vshrl.u32 %v38, 7
  %v40 = vstv %s37
  %v41 = vadd.s32 %v40, %v39
  %vm42 = vcmp.lt.s32.totalorder %v41, 8
  %v43 = vsel %vm42, %v36, 0.0
  %vm44 = vcmask 7168
  %45 = vst.msk [vmem:[%s2] sm:$0xff] %vm44, %v43
  // Predicated region
  $region10: #{cross_entropy.1} parent=0 // pred_check
    _
  $region11: #{cross_entropy.1} parent=0 // pred_check_branch
    %47 = sbr.rel (0) target = $region13
  $region12: #{cross_entropy.1} parent=0 // pred_region
    _
  $region13: #{cross_entropy.1} parent=0 // pred_fallthru
    _
  // Predicated region
  $region14: #{cross_entropy.1} parent=0 // pred_check
    _
  $region15: #{cross_entropy.1} parent=0 // pred_check_branch
    %49 = sbr.rel (0) target = $region17
  $region16: #{cross_entropy.1} parent=0 // pred_region
    _
  $region17: #{cross_entropy.1} parent=0 // pred_fallthru
    _

</llo_original>
